<compile_context>
chip_gen: v5e
topology: v5e:2x2
jax: 0.10.0
libtpu: 0.0.40
codegen_flags: <defaults>
</compile_context>

<pallas_src>
import jax
import jax.numpy as jnp
from jax import lax
from jax.experimental import pallas as pl
from jax.experimental.pallas import tpu as pltpu
import numpy as np

# The four fixed 3x3 filters, in the order PyTorch concatenates them.
_FILTERS = (
    ((0.0, 0.0, 0.0), (0.0, 1.0, 0.0), (0.0, 0.0, 0.0)),     # identity
    ((1.0, 0.0, -1.0), (2.0, 0.0, -2.0), (1.0, 0.0, -1.0)),  # sobel_x
    ((1.0, 2.0, 1.0), (0.0, 0.0, 0.0), (-1.0, -2.0, -1.0)),  # sobel_y
    ((0.0, 1.0, 0.0), (1.0, -4.0, 1.0), (0.0, 1.0, 0.0)),    # laplace
)

# Non-center 3x3 tap directions (row offset a, col offset b), fixed order shared
# by the mask table and the kernel.
_DIRS = tuple((a, b) for a in (-1, 0, 1) for b in (-1, 0, 1) if not (a == 0 and b == 0))


def _edge_masks(h, w):
    """(8, H*W) f32 validity masks: mask[k, y*W + x] == 0 iff reading the
    neighbour at direction _DIRS[k] from output position (y, x) would fall
    outside the (zero-padded) image."""
    m = np.ones((len(_DIRS), h, w), dtype=np.float32)
    for k, (a, b) in enumerate(_DIRS):
        if a == -1:
            m[k, 0, :] = 0.0
        if a == 1:
            m[k, h - 1, :] = 0.0
        if b == -1:
            m[k, :, 0] = 0.0
        if b == 1:
            m[k, :, w - 1] = 0.0
    return jnp.asarray(m.reshape(len(_DIRS), h * w))


def _vmem_capacity_bytes():
    try:
        return int(pltpu.get_tpu_info().vmem_capacity_bytes)
    except Exception:
        return 64 * 1024 * 1024  # conservative: v7x per-TensorCore VMEM


def _choose_channel_block(n, hw, itemsize, vmem_budget):
    """Channel-block size: as large as the VMEM budget allows while preferring
    >= 4 grid steps (2 per TensorCore on v7x) and a legal sublane extent
    (multiple of 8, or the full dim)."""
    # Double-buffered input block + double-buffered 4x output block + ~14 live
    # f32 intermediates per channel (rolled/masked views + filter results).
    per_chan = hw * (2 * itemsize + 2 * 4 * itemsize + 14 * 4)
    cap = max(1, vmem_budget // per_chan)
    target = -(-n // 4)                      # block size giving ~4 grid steps
    c_blk = max(1, min(n, cap, target))
    if c_blk == n:
        return n                             # full extent: always a legal block dim
    if c_blk >= 8:
        return (c_blk // 8) * 8              # multiple-of-8 sublanes
    return n if n < 8 else 8


def _make_perception_kernel(h, w):
    hw = h * w

    def kernel(x_ref, mask_ref, o_ref):
        # x_ref:    (c_blk, H*W)          lane-dense input channels
        # mask_ref: (8, H*W) f32          edge-validity masks per tap direction
        # o_ref:    (c_blk, 4*H*W)        [identity | sobel_x | sobel_y | laplace]
        xf = x_ref[...].astype(jnp.float32)
        masks = mask_ref[...]

        # Shifted neighbour views via static lane rotation (XLU) + edge masks
        # (VPU).  roll wrap-around only hits positions the mask zeroes anyway.
        s = {(0, 0): xf}
        for k, (a, b) in enumerate(_DIRS):
            off = a * w + b                          # flat-index offset of neighbour
            rolled = pltpu.roll(xf, shift=(-off) % hw, axis=1)
            s[(a, b)] = rolled * masks[k:k + 1, :]

        sobel_x = ((s[(-1, -1)] - s[(-1, 1)])
                   + 2.0 * (s[(0, -1)] - s[(0, 1)])
                   + (s[(1, -1)] - s[(1, 1)]))
        sobel_y = ((s[(-1, -1)] - s[(1, -1)])
                   + 2.0 * (s[(-1, 0)] - s[(1, 0)])
                   + (s[(-1, 1)] - s[(1, 1)]))
        laplace = (s[(-1, 0)] + s[(0, -1)] + s[(0, 1)] + s[(1, 0)]) - 4.0 * xf

        o_ref[:, 0 * hw:1 * hw] = xf.astype(o_ref.dtype)         # identity
        o_ref[:, 1 * hw:2 * hw] = sobel_x.astype(o_ref.dtype)
        o_ref[:, 2 * hw:3 * hw] = sobel_y.astype(o_ref.dtype)
        o_ref[:, 3 * hw:4 * hw] = laplace.astype(o_ref.dtype)

    return kernel


def perception(x):
    """Pallas equivalent of Perception.forward.  x: (B, C, H, W) -> (B, 4*C, H, W)."""
    B, C, H, W = x.shape
    N = B * C
    HW = H * W
    itemsize = jnp.dtype(x.dtype).itemsize

    # Metadata-only reshape: merge batch & channel, flatten spatial dims (lane-dense).
    x2 = x.reshape(N, HW)
    masks = _edge_masks(H, W)

    vmem = _vmem_capacity_bytes()
    vmem_budget = min((vmem * 3) // 4, 64 * 1024 * 1024)     # ~48 MiB v7x, 64 MiB v5e/v6e
    vmem_limit = int(min((vmem * 7) // 8, vmem_budget + 16 * 1024 * 1024))

    c_blk = _choose_channel_block(N, HW, itemsize, vmem_budget)
    grid = (pl.cdiv(N, c_blk),)

    cost = pl.CostEstimate(
        flops=30 * N * HW,                              # ~8 masked muls + ~16 adds / pixel
        transcendentals=0,
        bytes_accessed=5 * N * HW * itemsize,           # read x once, write 4x
    )

    kernel = _make_perception_kernel(H, W)
    out2 = pl.pallas_call(
        kernel,
        out_shape=jax.ShapeDtypeStruct((N, 4 * HW), x.dtype),
        grid_spec=pltpu.PrefetchScalarGridSpec(
            num_scalar_prefetch=0,
            grid=grid,
            in_specs=[
                pl.BlockSpec((c_blk, HW), lambda i: (i, 0)),
                pl.BlockSpec((len(_DIRS), HW), lambda i: (0, 0)),
            ],
            out_specs=pl.BlockSpec((c_blk, 4 * HW), lambda i: (i, 0)),
        ),
        compiler_params=pltpu.CompilerParams(
            dimension_semantics=("parallel",),
            vmem_limit_bytes=vmem_limit,
        ),
        cost_estimate=cost,
    )(x2, masks)

    # (B*C, 4*H*W) -> (B, 4*C, H, W): out[b, 4*c + j] = filter_j(x[b, c]).
    # Pure metadata reshape (contiguous splits only), no data movement.
    return out2.reshape(B, 4 * C, H, W)


def perception_reference(x):
    """Pure-JAX reference mirroring F.conv2d(x, weight, padding=1, groups=C)."""
    B, C, H, W = x.shape
    base = jnp.array(_FILTERS, dtype=jnp.float32).reshape(4, 1, 3, 3)
    weight = jnp.tile(base, (C, 1, 1, 1))  # (4*C, 1, 3, 3), same order as torch repeat
    return lax.conv_general_dilated(
        x.astype(jnp.float32), weight,
        window_strides=(1, 1),
        padding=((1, 1), (1, 1)),
        dimension_numbers=("NCHW", "OIHW", "NCHW"),
        feature_group_count=C,
    ).astype(x.dtype)


if __name__ == "__main__":
    key = jax.random.PRNGKey(0)
    B, C, H, W = 2, 4, 16, 16
    x = jax.random.normal(key, (B, C, H, W), dtype=jnp.float32)

    out = jax.block_until_ready(perception(x))
    ref = jax.block_until_ready(perception_reference(x))

    assert out.shape == (B, 4 * C, H, W)
    np.testing.assert_allclose(np.asarray(out), np.asarray(ref), rtol=1e-5, atol=1e-5)

    print("KERNEL_OK")
</pallas_src>

<mosaic_0001>
module attributes {stable_mosaic.version = 11 : i64} {
  func.func @kernel(%arg0: i32, %arg1: memref<8x256xf32, #tpu.memory_space<vmem>>, %arg2: memref<8x256xf32, #tpu.memory_space<vmem>>, %arg3: memref<8x1024xf32, #tpu.memory_space<vmem>>) attributes {dimension_semantics = [#tpu.dimension_semantics<parallel>], iteration_bounds = array<i64: 1>, scalar_prefetch = 0 : i64, scratch_operands = 0 : i64, tpu.core_type = #tpu.core_type<tc>, window_params = [{transform_indices = @transform_0, window_bounds = array<i64: 8, 256>}, {pipeline_mode = #tpu.pipeline_mode<synchronous>, transform_indices = @transform_1, window_bounds = array<i64: 8, 256>}, {transform_indices = @transform_2, window_bounds = array<i64: 8, 1024>}]} {
    %c0 = arith.constant 0 : index
    %c0_0 = arith.constant 0 : index
    %0 = vector.load %arg1[%c0, %c0_0] : memref<8x256xf32, #tpu.memory_space<vmem>>, vector<8x256xf32>
    %c0_1 = arith.constant 0 : index
    %c0_2 = arith.constant 0 : index
    %1 = vector.load %arg2[%c0_1, %c0_2] : memref<8x256xf32, #tpu.memory_space<vmem>>, vector<8x256xf32>
    %c17_i32 = arith.constant 17 : i32
    %2 = tpu.dynamic_rotate %0 by %c17_i32 dim 1 : vector<8x256xf32>, i32 -> vector<8x256xf32>
    %3 = vector.extract_strided_slice %1 {offsets = [0, 0], sizes = [1, 256], strides = [1, 1]} : vector<8x256xf32> to vector<1x256xf32>
    %4 = vector.broadcast %3 : vector<1x256xf32> to vector<8x256xf32>
    %5 = arith.mulf %2, %4 : vector<8x256xf32>
    %c16_i32 = arith.constant 16 : i32
    %6 = tpu.dynamic_rotate %0 by %c16_i32 dim 1 : vector<8x256xf32>, i32 -> vector<8x256xf32>
    %7 = vector.extract_strided_slice %1 {offsets = [1, 0], sizes = [1, 256], strides = [1, 1]} : vector<8x256xf32> to vector<1x256xf32>
    %8 = vector.broadcast %7 : vector<1x256xf32> to vector<8x256xf32>
    %9 = arith.mulf %6, %8 : vector<8x256xf32>
    %c15_i32 = arith.constant 15 : i32
    %10 = tpu.dynamic_rotate %0 by %c15_i32 dim 1 : vector<8x256xf32>, i32 -> vector<8x256xf32>
    %11 = vector.extract_strided_slice %1 {offsets = [2, 0], sizes = [1, 256], strides = [1, 1]} : vector<8x256xf32> to vector<1x256xf32>
    %12 = vector.broadcast %11 : vector<1x256xf32> to vector<8x256xf32>
    %13 = arith.mulf %10, %12 : vector<8x256xf32>
    %c1_i32 = arith.constant 1 : i32
    %14 = tpu.dynamic_rotate %0 by %c1_i32 dim 1 : vector<8x256xf32>, i32 -> vector<8x256xf32>
    %15 = vector.extract_strided_slice %1 {offsets = [3, 0], sizes = [1, 256], strides = [1, 1]} : vector<8x256xf32> to vector<1x256xf32>
    %16 = vector.broadcast %15 : vector<1x256xf32> to vector<8x256xf32>
    %17 = arith.mulf %14, %16 : vector<8x256xf32>
    %c255_i32 = arith.constant 255 : i32
    %18 = tpu.dynamic_rotate %0 by %c255_i32 dim 1 : vector<8x256xf32>, i32 -> vector<8x256xf32>
    %19 = vector.extract_strided_slice %1 {offsets = [4, 0], sizes = [1, 256], strides = [1, 1]} : vector<8x256xf32> to vector<1x256xf32>
    %20 = vector.broadcast %19 : vector<1x256xf32> to vector<8x256xf32>
    %21 = arith.mulf %18, %20 : vector<8x256xf32>
    %c241_i32 = arith.constant 241 : i32
    %22 = tpu.dynamic_rotate %0 by %c241_i32 dim 1 : vector<8x256xf32>, i32 -> vector<8x256xf32>
    %23 = vector.extract_strided_slice %1 {offsets = [5, 0], sizes = [1, 256], strides = [1, 1]} : vector<8x256xf32> to vector<1x256xf32>
    %24 = vector.broadcast %23 : vector<1x256xf32> to vector<8x256xf32>
    %25 = arith.mulf %22, %24 : vector<8x256xf32>
    %c240_i32 = arith.constant 240 : i32
    %26 = tpu.dynamic_rotate %0 by %c240_i32 dim 1 : vector<8x256xf32>, i32 -> vector<8x256xf32>
    %27 = vector.extract_strided_slice %1 {offsets = [6, 0], sizes = [1, 256], strides = [1, 1]} : vector<8x256xf32> to vector<1x256xf32>
    %28 = vector.broadcast %27 : vector<1x256xf32> to vector<8x256xf32>
    %29 = arith.mulf %26, %28 : vector<8x256xf32>
    %c239_i32 = arith.constant 239 : i32
    %30 = tpu.dynamic_rotate %0 by %c239_i32 dim 1 : vector<8x256xf32>, i32 -> vector<8x256xf32>
    %31 = vector.extract_strided_slice %1 {offsets = [7, 0], sizes = [1, 256], strides = [1, 1]} : vector<8x256xf32> to vector<1x256xf32>
    %32 = vector.broadcast %31 : vector<1x256xf32> to vector<8x256xf32>
    %33 = arith.mulf %30, %32 : vector<8x256xf32>
    %34 = arith.subf %5, %13 : vector<8x256xf32>
    %35 = arith.subf %17, %21 : vector<8x256xf32>
    %cst = arith.constant 2.000000e+00 : f32
    %36 = vector.broadcast %cst : f32 to vector<8x256xf32>
    %37 = arith.mulf %36, %35 : vector<8x256xf32>
    %38 = arith.addf %34, %37 : vector<8x256xf32>
    %39 = arith.subf %25, %33 : vector<8x256xf32>
    %40 = arith.addf %38, %39 : vector<8x256xf32>
    %41 = arith.subf %5, %25 : vector<8x256xf32>
    %42 = arith.subf %9, %29 : vector<8x256xf32>
    %cst_3 = arith.constant 2.000000e+00 : f32
    %43 = vector.broadcast %cst_3 : f32 to vector<8x256xf32>
    %44 = arith.mulf %43, %42 : vector<8x256xf32>
    %45 = arith.addf %41, %44 : vector<8x256xf32>
    %46 = arith.subf %13, %33 : vector<8x256xf32>
    %47 = arith.addf %45, %46 : vector<8x256xf32>
    %48 = arith.addf %9, %17 : vector<8x256xf32>
    %49 = arith.addf %48, %21 : vector<8x256xf32>
    %50 = arith.addf %49, %29 : vector<8x256xf32>
    %cst_4 = arith.constant 4.000000e+00 : f32
    %51 = vector.broadcast %cst_4 : f32 to vector<8x256xf32>
    %52 = arith.mulf %51, %0 : vector<8x256xf32>
    %53 = arith.subf %50, %52 : vector<8x256xf32>
    %c0_5 = arith.constant 0 : index
    %c0_6 = arith.constant 0 : index
    %54 = vector.load %arg3[%c0_5, %c0_6] : memref<8x1024xf32, #tpu.memory_space<vmem>>, vector<8x256xf32>
    tpu.vector_store %arg3[%c0_5, %c0_6], %0 {strides = array<i32>} : memref<8x1024xf32, #tpu.memory_space<vmem>>, vector<8x256xf32>,
    %c0_7 = arith.constant 0 : index
    %c256 = arith.constant 256 : index
    %55 = vector.load %arg3[%c0_7, %c256] : memref<8x1024xf32, #tpu.memory_space<vmem>>, vector<8x256xf32>
    tpu.vector_store %arg3[%c0_7, %c256], %40 {strides = array<i32>} : memref<8x1024xf32, #tpu.memory_space<vmem>>, vector<8x256xf32>,
    %c0_8 = arith.constant 0 : index
    %c512 = arith.constant 512 : index
    %56 = vector.load %arg3[%c0_8, %c512] : memref<8x1024xf32, #tpu.memory_space<vmem>>, vector<8x256xf32>
    tpu.vector_store %arg3[%c0_8, %c512], %47 {strides = array<i32>} : memref<8x1024xf32, #tpu.memory_space<vmem>>, vector<8x256xf32>,
    %c0_9 = arith.constant 0 : index
    %c768 = arith.constant 768 : index
    %57 = vector.load %arg3[%c0_9, %c768] : memref<8x1024xf32, #tpu.memory_space<vmem>>, vector<8x256xf32>
    tpu.vector_store %arg3[%c0_9, %c768], %53 {strides = array<i32>} : memref<8x1024xf32, #tpu.memory_space<vmem>>, vector<8x256xf32>,
    return
  }
  func.func @transform_0(%arg0: i32) -> (i32, i32) {
    %c0_i32 = arith.constant 0 : i32
    %c0_i32_0 = arith.constant 0 : i32
    return %arg0, %c0_i32 : i32, i32
  }
  func.func @transform_1(%arg0: i32) -> (i32, i32) {
    %c0_i32 = arith.constant 0 : i32
    %c0_i32_0 = arith.constant 0 : i32
    %c0_i32_1 = arith.constant 0 : i32
    return %c0_i32, %c0_i32_0 : i32, i32
  }
  func.func @transform_2(%arg0: i32) -> (i32, i32) {
    %c0_i32 = arith.constant 0 : i32
    %c0_i32_0 = arith.constant 0 : i32
    return %arg0, %c0_i32 : i32, i32
  }
}

</mosaic_0001>

<llo_original>
// kernel: tpu_custom_call.1
$region0: #{tpu_custom_call.1}
  #allocation0 [shape = 'u32[]', space=smem, size = 0x4, offset = 0x4, fixed_abs, tag = 'smem constant byte address 0x4 - core index']
  #allocation1 [shape = 'u32[72,128]{1,0:T(1,128)}', space=vmem, size = 0x9000, scoped, tag = 'internal scratch']
  %s0 = inlined_call_operand.hbm [shape: f32[8,256], index: 0, kind: input, shape index: {}]
  %s1 = inlined_call_operand.hbm [shape: f32[8,256], index: 1, kind: input, shape index: {}]
  %s2 = inlined_call_operand.hbm [shape: f32[8,1024], index: 2, kind: output, shape index: {}]
  %s3 = sld [smem:[#allocation0]]
  $region26: #{tpu_custom_call.1} parent=0
    _
  %s5 = ssub.s32 1, %s3
  %s6 = scalar_select 0, %s5, %s3
  $region1: #{tpu_custom_call.1} parent=0
    #allocation2 [shape = 'u8[8192]{0}', space=vmem, size = 0x2000, scoped, tag = 'input window, operand 0, single buffered']
    #allocation3 [shape = 's32[1]{0}', space=sflag, size = 0x4, scoped, tag = 'scoped memory for tpu_custom_call.1']
    #allocation4 [shape = 's32[1]{0}', space=sflag, size = 0x4, scoped, tag = 'scoped memory for tpu_custom_call.1']
    #allocation5 [shape = 'u8[8192]{0}', space=vmem, size = 0x2000, scoped, tag = 'input window, operand 1, single buffered']
    #allocation6 [shape = 's32[1]{0}', space=sflag, size = 0x4, scoped, tag = 'scoped memory for tpu_custom_call.1']
    #allocation7 [shape = 'u8[32768]{0}', space=vmem, size = 0x8000, scoped, tag = 'output window, operand 0, single buffered']
    %7 = vsyncpa [#allocation3], 0
    %8 = vsyncpa [#allocation6], 0
    %9 = vsyncpa [#allocation4], 0
    // Predicated region
    $region2: #{tpu_custom_call.1} parent=1 // pred_check
      _
    $region3: #{tpu_custom_call.1} parent=1 // pred_check_branch
      %11 = sbr.rel (0) target = $region5
    $region4: #{tpu_custom_call.1} parent=1 // pred_region
      %13 = vsyncadd [#allocation3], 0
      %s15 = sshll.u32 %s0, 4
      %s16 = int_to_ptr.hbm [resolvable:$true] %s15
      %s17 = sshll.u32 [#allocation2], 4
      %s18 = int_to_ptr.vmem [resolvable:$true] %s17
      %20 = dma.hbm_to_vmem [thread:$0]  %s16, 256, %s18, [#allocation3]
    $region5: #{tpu_custom_call.1} parent=1 // pred_fallthru
      _
    // Predicated region
    $region6: #{tpu_custom_call.1} parent=1 // pred_check
      _
    $region7: #{tpu_custom_call.1} parent=1 // pred_check_branch
      %22 = sbr.rel (0) target = $region9
    $region8: #{tpu_custom_call.1} parent=1 // pred_region
      %24 = vsyncadd [#allocation6], 0
      %s26 = sshll.u32 %s1, 4
      %s27 = int_to_ptr.hbm [resolvable:$true] %s26
      %s28 = sshll.u32 [#allocation5], 4
      %s29 = int_to_ptr.vmem [resolvable:$true] %s28
      %31 = dma.hbm_to_vmem [thread:$0]  %s27, 256, %s29, [#allocation6]
    $region9: #{tpu_custom_call.1} parent=1 // pred_fallthru
      _
    // Predicated region
    $region10: #{tpu_custom_call.1} parent=1 // pred_check
      _
    $region11: #{tpu_custom_call.1} parent=1 // pred_check_branch
      %33 = sbr.rel (0) target = $region13
    $region12: #{tpu_custom_call.1} parent=1 // pred_region
      %35 = dma.done [#allocation3], 256
    $region13: #{tpu_custom_call.1} parent=1 // pred_fallthru
      _
    // Predicated region
    $region14: #{tpu_custom_call.1} parent=1 // pred_check
      _
    $region15: #{tpu_custom_call.1} parent=1 // pred_check_branch
      %37 = sbr.rel (0) target = $region17
    $region16: #{tpu_custom_call.1} parent=1 // pred_region
      %39 = dma.done [#allocation6], 256
    $region17: #{tpu_custom_call.1} parent=1 // pred_fallthru
      _
    %v40 = vld [vmem:[#allocation2] sm:$0xff]
    %v41 = vld [vmem:[#allocation2 + $0x8] sm:$0xff]
    %v42 = vld [vmem:[#allocation5] sm:$0xff]
    %v43 = vld [vmem:[#allocation5 + $0x8] sm:$0xff]
    %44 = vrot.lane.b32.xlu0 %v40, 17
    %v45 = vpop.permute.xlu0 %44
    %46 = vrot.lane.b32.xlu0 %v41, 17
    %v47 = vpop.permute.xlu0 %46
    %v48 = vlaneseq
    %v49 = vand.u32 %v48, 127
    %vm50 = vcmp.lt.s32.totalorder %v49, 17
    %v51 = vsel %vm50, %v45, %v47
    %v52 = vsel %vm50, %v47, %v45
    %v53 = vperm.slane %v42, 0
    %v54 = vperm.slane %v43, 0
    %v55 = vmul.f32 %v52, %v53
    %v56 = vmul.f32 %v51, %v54
    %57 = vrot.lane.b32.xlu0 %v40, 16
    %v58 = vpop.permute.xlu0 %57
    %59 = vrot.lane.b32.xlu0 %v41, 16
    %v60 = vpop.permute.xlu0 %59
    %vm61 = vcmp.lt.s32.totalorder %v49, 16
    %v62 = vsel %vm61, %v58, %v60
    %v63 = vsel %vm61, %v60, %v58
    %v64 = vperm.slane %v42, 1
    %v65 = vperm.slane %v43, 1
    %v66 = vmul.f32 %v63, %v64
    %v67 = vmul.f32 %v62, %v65
    %68 = vrot.lane.b32.xlu0 %v40, 15
    %v69 = vpop.permute.xlu0 %68
    %70 = vrot.lane.b32.xlu0 %v41, 15
    %v71 = vpop.permute.xlu0 %70
    %vm72 = vcmp.lt.s32.totalorder %v49, 15
    %v73 = vsel %vm72, %v69, %v71
    %v74 = vsel %vm72, %v71, %v69
    %v75 = vperm.slane %v42, 2
    %v76 = vperm.slane %v43, 2
    %v77 = vmul.f32 %v74, %v75
    %v78 = vmul.f32 %v73, %v76
    %79 = vrot.lane.b32.xlu0 %v40, 1
    %v80 = vpop.permute.xlu0 %79
    %81 = vrot.lane.b32.xlu0 %v41, 1
    %v82 = vpop.permute.xlu0 %81
    %vm83 = vcmp.lt.s32.totalorder %v49, 1
    %v84 = vsel %vm83, %v80, %v82
    %v85 = vsel %vm83, %v82, %v80
    %v86 = vperm.slane %v42, 3
    %v87 = vperm.slane %v43, 3
    %v88 = vmul.f32 %v85, %v86
    %v89 = vmul.f32 %v84, %v87
    %90 = vrot.lane.b32.xlu0 %v40, 127
    %v91 = vpop.permute.xlu0 %90
    %92 = vrot.lane.b32.xlu0 %v41, 127
    %v93 = vpop.permute.xlu0 %92
    %vm94 = vcmp.lt.s32.totalorder %v49, 127
    %v95 = vsel %vm94, %v91, %v93
    %v96 = vsel %vm94, %v93, %v91
    %v97 = vperm.slane %v42, 4
    %v98 = vperm.slane %v43, 4
    %v99 = vmul.f32 %v95, %v97
    %v100 = vmul.f32 %v96, %v98
    %101 = vrot.lane.b32.xlu0 %v40, 113
    %v102 = vpop.permute.xlu0 %101
    %103 = vrot.lane.b32.xlu0 %v41, 113
    %v104 = vpop.permute.xlu0 %103
    %vm105 = vcmp.lt.s32.totalorder %v49, 113
    %v106 = vsel %vm105, %v102, %v104
    %v107 = vsel %vm105, %v104, %v102
    %v108 = vperm.slane %v42, 5
    %v109 = vperm.slane %v43, 5
    %v110 = vmul.f32 %v106, %v108
    %v111 = vmul.f32 %v107, %v109
    %112 = vrot.lane.b32.xlu0 %v40, 112
    %v113 = vpop.permute.xlu0 %112
    %114 = vrot.lane.b32.xlu0 %v41, 112
    %v115 = vpop.permute.xlu0 %114
    %vm116 = vcmp.lt.s32.totalorder %v49, 112
    %v117 = vsel %vm116, %v113, %v115
    %v118 = vsel %vm116, %v115, %v113
    %v119 = vperm.slane %v42, 6
    %v120 = vperm.slane %v43, 6
    %v121 = vmul.f32 %v117, %v119
    %v122 = vmul.f32 %v118, %v120
    %123 = vrot.lane.b32.xlu0 %v40, 111
    %v124 = vpop.permute.xlu0 %123
    %125 = vrot.lane.b32.xlu0 %v41, 111
    %v126 = vpop.permute.xlu0 %125
    %vm127 = vcmp.lt.s32.totalorder %v49, 111
    %v128 = vsel %vm127, %v124, %v126
    %v129 = vsel %vm127, %v126, %v124
    %v130 = vperm.slane %v42, 7
    %v131 = vperm.slane %v43, 7
    %v132 = vmul.f32 %v128, %v130
    %v133 = vmul.f32 %v129, %v131
    %v134 = vsub.f32 %v55, %v77
    %v135 = vsub.f32 %v56, %v78
    %v136 = vsub.f32 %v88, %v99
    %v137 = vsub.f32 %v89, %v100
    %v138 = vmul.f32 %v136, 2.0
    %v139 = vmul.f32 %v137, 2.0
    %v140 = vadd.f32 %v134, %v138
    %v141 = vadd.f32 %v135, %v139
    %v142 = vsub.f32 %v110, %v132
    %v143 = vsub.f32 %v111, %v133
    %v144 = vadd.f32 %v140, %v142
    %v145 = vadd.f32 %v141, %v143
    %v146 = vsub.f32 %v55, %v110
    %v147 = vsub.f32 %v56, %v111
    %v148 = vsub.f32 %v66, %v121
    %v149 = vsub.f32 %v67, %v122
    %v150 = vmul.f32 %v148, 2.0
    %v151 = vmul.f32 %v149, 2.0
    %v152 = vadd.f32 %v146, %v150
    %v153 = vadd.f32 %v147, %v151
    %v154 = vsub.f32 %v77, %v132
    %v155 = vsub.f32 %v78, %v133
    %v156 = vadd.f32 %v152, %v154
    %v157 = vadd.f32 %v153, %v155
    %v158 = vadd.f32 %v66, %v88
    %v159 = vadd.f32 %v67, %v89
    %v160 = vadd.f32 %v158, %v99
    %v161 = vadd.f32 %v159, %v100
    %v162 = vadd.f32 %v160, %v121
    %v163 = vadd.f32 %v161, %v122
    %v164 = vmul.f32 %v40, 4.0
    %v165 = vmul.f32 %v41, 4.0
    %v166 = vsub.f32 %v162, %v164
    %v167 = vsub.f32 %v163, %v165
    %168 = vst [vmem:[#allocation7] sm:$0xff] %v40
    %169 = vst [vmem:[#allocation7 + $0x8] sm:$0xff] %v41
    %170 = vst [vmem:[#allocation7 + $0x10] sm:$0xff] %v144
    %171 = vst [vmem:[#allocation7 + $0x18] sm:$0xff] %v145
    %172 = vst [vmem:[#allocation7 + $0x20] sm:$0xff] %v156
    %173 = vst [vmem:[#allocation7 + $0x28] sm:$0xff] %v157
    %174 = vst [vmem:[#allocation7 + $0x30] sm:$0xff] %v166
    %175 = vst [vmem:[#allocation7 + $0x38] sm:$0xff] %v167
    // Predicated region
    $region18: #{tpu_custom_call.1} parent=1 // pred_check
      _
    $region19: #{tpu_custom_call.1} parent=1 // pred_check_branch
      %177 = sbr.rel (0) target = $region21
    $region20: #{tpu_custom_call.1} parent=1 // pred_region
      %179 = vsyncadd [#allocation4], 0
      %s181 = sshll.u32 [#allocation7], 4
      %s182 = int_to_ptr.vmem [resolvable:$true] %s181
      %s183 = sshll.u32 %s2, 4
      %s184 = int_to_ptr.hbm [resolvable:$true] %s183
      %186 = dma.vmem_to_hbm [thread:$0]  %s182, 1024, %s184, [#allocation4]
    $region21: #{tpu_custom_call.1} parent=1 // pred_fallthru
      _
    // Predicated region
    $region22: #{tpu_custom_call.1} parent=1 // pred_check
      _
    $region23: #{tpu_custom_call.1} parent=1 // pred_check_branch
      %188 = sbr.rel (0) target = $region25
    $region24: #{tpu_custom_call.1} parent=1 // pred_region
      %190 = dma.done [#allocation4], 1024
    $region25: #{tpu_custom_call.1} parent=1 // pred_fallthru
      _
    %191 = vsyncpa [#allocation3], 1
    %192 = vsyncpa [#allocation6], 1
    %193 = vsyncpa [#allocation4], 1

</llo_original>
